<compile_context>
chip_gen: v7x
topology: tpu7x:2x2x1
jax: 0.10.0
libtpu: 0.0.40
codegen_flags: <defaults>
</compile_context>

<pallas_src>
import math

import jax
import jax.numpy as jnp
from jax.experimental import pallas as pl
from jax.experimental.pallas import tpu as pltpu


def _pe_add_kernel(x_ref, pe_ref, o_ref):
    # x_ref: (Bt, T*F) lane-dense tile; pe_ref: (1, T*F) f32 row, same block
    # every grid step -> stays resident in VMEM. Broadcast add over the
    # sublane (batch) axis; accumulate in f32, cast to the output dtype.
    o_ref[...] = (x_ref[...].astype(jnp.float32) + pe_ref[...]).astype(o_ref.dtype)


def make_pe_table(outfea: int, max_len: int = 12) -> jnp.ndarray:
    """Deterministic PE table, same math as the PyTorch __init__ (odd-F safe)."""
    position = jnp.arange(0, max_len, dtype=jnp.float32)[:, None]            # (T, 1)
    div_term = jnp.exp(
        jnp.arange(0, outfea, 2, dtype=jnp.float32) * -(math.log(10000.0) / outfea)
    )                                                                         # (ceil(F/2),)
    angles = position * div_term                                              # (T, ceil(F/2))
    pe = jnp.zeros((max_len, outfea), dtype=jnp.float32)
    pe = pe.at[:, 0::2].set(jnp.sin(angles))
    pe = pe.at[:, 1::2].set(jnp.cos(angles)[:, : outfea // 2])                # guard odd F
    return pe                                                                 # (T, F)


def _num_tensorcores() -> int:
    """Best-effort TensorCore count of the local device (2 on v7x, else 1)."""
    try:
        kind = jax.devices()[0].device_kind.lower()
        if "v7" in kind or "7x" in kind:
            return 2
    except Exception:
        pass
    return 1


def _plain_add(x, pe):
    return (x.astype(jnp.float32) + pe[None, :, :].astype(jnp.float32)).astype(x.dtype)


def positional_encoding_forward(
    x: jnp.ndarray,
    pe: jnp.ndarray,
    *,
    target_block_bytes: int = 4 << 20,
    small_input_bytes: int = 4 << 20,
    force_pallas: bool = False,
    donate_x: bool = False,
) -> jnp.ndarray:
    """x: (B, T, F), pe: (T, F) -> (B, T, F); out = x + pe[None]."""
    B, T, F = x.shape
    assert pe.shape == (T, F)
    TF = T * F
    itemsize = jnp.dtype(x.dtype).itemsize
    total_bytes = B * TF * itemsize

    # Small-input bail-out: the custom-call launch/DMA setup dominates and
    # blocks XLA fusion for tiny tensors — plain fused elementwise add wins.
    if not force_pallas and total_bytes < small_input_bytes:
        return _plain_add(x, pe)

    if TF % 128 != 0:
        # TODO(synk): lane-dense Pallas path for T*F % 128 != 0 (pad F to 128
        # or block on (B*T, F)); plain-JAX fallback keeps semantics for now.
        return _plain_add(x, pe)

    x2 = x.reshape(B, TF)
    pe2 = pe.astype(jnp.float32).reshape(1, TF)
    row_bytes = TF * itemsize

    # Sublane packing per dtype: 8 rows (f32), 16 (bf16/f16), 32 (int8/fp8).
    sub = max(8, 32 // itemsize)

    if B <= sub:
        # Tiny batch: one full block (block dims == full array dims, so the
        # (8, 128) divisibility rule is trivially satisfied).
        bt = B
    else:
        # As many rows as fit the block budget, sublane-aligned.
        bt = max(sub, (target_block_bytes // max(row_bytes, 1)) // sub * sub)
        bt = min(bt, (B // sub) * sub)
        if _num_tensorcores() > 1:
            # v7x only: keep an even (>= 2) step count so the "parallel" grid
            # axis balances across both TensorCores.
            while bt > sub and (pl.cdiv(B, bt) < 2 or pl.cdiv(B, bt) % 2 != 0):
                bt = max(sub, (bt - sub) // sub * sub)

    grid = (pl.cdiv(B, bt),)

    cost = pl.CostEstimate(
        flops=B * TF,
        transcendentals=0,
        bytes_accessed=2 * B * TF * itemsize + TF * 4,
    )

    extra_kwargs = {}
    if donate_x:
        extra_kwargs["input_output_aliases"] = {0: 0}

    out2 = pl.pallas_call(
        _pe_add_kernel,
        out_shape=jax.ShapeDtypeStruct((B, TF), x.dtype),
        grid_spec=pl.GridSpec(
            grid=grid,
            in_specs=[
                # Batch tile of the input (lane-dense last dim).
                pl.BlockSpec((bt, TF), lambda i: (i, 0)),
                # PE row: same block every step -> resident in VMEM.
                pl.BlockSpec((1, TF), lambda i: (0, 0)),
            ],
            out_specs=pl.BlockSpec((bt, TF), lambda i: (i, 0)),
        ),
        compiler_params=pltpu.CompilerParams(
            dimension_semantics=("parallel",),
            # Raise v5e's 16 MiB default scoped VMEM; stays within v7x/v6e
            # defaults and leaves headroom for the ~16 MiB block footprint.
            vmem_limit_bytes=32 << 20,
        ),
        cost_estimate=cost,
        **extra_kwargs,
    )(x2, pe2)

    return out2.reshape(B, T, F)


if __name__ == "__main__":
    # Small shapes consistent with the module: max_len=12, outfea=32, batch=2.
    B, MAX_LEN, OUTFEA = 2, 12, 32

    key = jax.random.PRNGKey(0)
    x = jax.random.normal(key, (B, MAX_LEN, OUTFEA), dtype=jnp.float32)
    pe = make_pe_table(OUTFEA, MAX_LEN)
    ref = x + pe[None, :, :]

    # 1) Pallas path (force past the small-input bail-out at demo shapes).
    out = jax.block_until_ready(positional_encoding_forward(x, pe, force_pallas=True))
    assert out.shape == x.shape and out.dtype == x.dtype
    assert jnp.allclose(out, ref, atol=1e-6, rtol=1e-6)

    # 2) Auto path (small-input bail-out -> plain fused XLA add) must agree.
    out_auto = jax.block_until_ready(positional_encoding_forward(x, pe))
    assert jnp.allclose(out_auto, ref, atol=1e-6, rtol=1e-6)

    # 3) Larger batch exercising a multi-step grid with a partial last block.
    B2 = 20
    x2 = jax.random.normal(jax.random.PRNGKey(1), (B2, MAX_LEN, OUTFEA), dtype=jnp.float32)
    out2 = jax.block_until_ready(positional_encoding_forward(x2, pe, force_pallas=True))
    assert jnp.allclose(out2, x2 + pe[None, :, :], atol=1e-6, rtol=1e-6)

    print("KERNEL_OK")
</pallas_src>

<mosaic_0001>
module attributes {stable_mosaic.version = 11 : i64} {
  func.func @_pe_add_kernel(%arg0: i32, %arg1: memref<2x384xf32, #tpu.memory_space<vmem>>, %arg2: memref<1x384xf32, #tpu.memory_space<vmem>>, %arg3: memref<2x384xf32, #tpu.memory_space<vmem>>) attributes {dimension_semantics = [#tpu.dimension_semantics<parallel>], iteration_bounds = array<i64: 1>, scalar_prefetch = 0 : i64, scratch_operands = 0 : i64, tpu.core_type = #tpu.core_type<tc>, window_params = [{transform_indices = @transform_0, window_bounds = array<i64: 2, 384>}, {pipeline_mode = #tpu.pipeline_mode<synchronous>, transform_indices = @transform_1, window_bounds = array<i64: 1, 384>}, {transform_indices = @transform_2, window_bounds = array<i64: 2, 384>}]} {
    %c0 = arith.constant 0 : index
    %c0_0 = arith.constant 0 : index
    %0 = vector.load %arg1[%c0, %c0_0] : memref<2x384xf32, #tpu.memory_space<vmem>>, vector<2x384xf32>
    %c0_1 = arith.constant 0 : index
    %c0_2 = arith.constant 0 : index
    %1 = vector.load %arg2[%c0_1, %c0_2] : memref<1x384xf32, #tpu.memory_space<vmem>>, vector<1x384xf32>
    %2 = vector.broadcast %1 : vector<1x384xf32> to vector<2x384xf32>
    %3 = arith.addf %0, %2 : vector<2x384xf32>
    %c0_3 = arith.constant 0 : index
    %c0_4 = arith.constant 0 : index
    %4 = vector.load %arg3[%c0_3, %c0_4] : memref<2x384xf32, #tpu.memory_space<vmem>>, vector<2x384xf32>
    tpu.vector_store %arg3[%c0_3, %c0_4], %3 {strides = array<i32>} : memref<2x384xf32, #tpu.memory_space<vmem>>, vector<2x384xf32>,
    return
  }
  func.func @transform_0(%arg0: i32) -> (i32, i32) {
    %c0_i32 = arith.constant 0 : i32
    %c0_i32_0 = arith.constant 0 : i32
    return %arg0, %c0_i32 : i32, i32
  }
  func.func @transform_1(%arg0: i32) -> (i32, i32) {
    %c0_i32 = arith.constant 0 : i32
    %c0_i32_0 = arith.constant 0 : i32
    %c0_i32_1 = arith.constant 0 : i32
    return %c0_i32, %c0_i32_0 : i32, i32
  }
  func.func @transform_2(%arg0: i32) -> (i32, i32) {
    %c0_i32 = arith.constant 0 : i32
    %c0_i32_0 = arith.constant 0 : i32
    return %arg0, %c0_i32 : i32, i32
  }
}

</mosaic_0001>

<llo_original>
// kernel: tpu_custom_call.1
$region0: #{tpu_custom_call.1}
  #allocation0 [shape = 'u32[]', space=smem, size = 0x4, offset = 0x4, fixed_abs, tag = 'smem constant byte address 0x4 - core index']
  #allocation1 [shape = 'u32[144,128]{1,0:T(1,128)}', space=vmem, size = 0x12000, scoped, tag = 'internal scratch']
  %s0 = inlined_call_operand.hbm [shape: f32[2,384], index: 0, kind: input, shape index: {}]
  %s1 = inlined_call_operand.vmem [shape: f32[1,384], index: 1, kind: input, shape index: {}]
  %s2 = inlined_call_operand.hbm [shape: f32[2,384], index: 2, kind: output, shape index: {}]
  %s3 = sld [smem:[#allocation0]]
  $region22: #{tpu_custom_call.1} parent=0
    _
  %s5 = ssub.s32 1, %s3
  %s6 = scalar_select 0, %s5, %s3
  $region1: #{tpu_custom_call.1} parent=0
    #allocation2 [shape = 'u8[3072]{0}', space=vmem, size = 0xc00, scoped, tag = 'input window, operand 0, single buffered']
    #allocation3 [shape = 's32[1]{0}', space=sflag, size = 0x4, scoped, tag = 'scoped memory for tpu_custom_call.1']
    #allocation4 [shape = 's32[1]{0}', space=sflag, size = 0x4, scoped, tag = 'scoped memory for tpu_custom_call.1']
    #allocation5 [shape = 'u8[3072]{0}', space=vmem, size = 0xc00, scoped, tag = 'output window, operand 0, single buffered']
    %7 = vsyncpa [#allocation3], 0
    %8 = vsyncpa [#allocation4], 0
    // Predicated region
    $region2: #{tpu_custom_call.1} parent=1 // pred_check
      _
    $region3: #{tpu_custom_call.1} parent=1 // pred_check_branch
      %10 = sbr.rel (0) target = $region5
    $region4: #{tpu_custom_call.1} parent=1 // pred_region
      %s12 = ssub.s32 96, 96
      %13 = vsyncadd [#allocation3], %s12
      %s15 = sshll.u32 [#allocation2], 4
      %s16 = int_to_ptr.vmem [resolvable:$true] %s15
      %18 = dma.hbm_to_vmem [thread:$0]  %s0, 96, %s16, [#allocation3]
    $region5: #{tpu_custom_call.1} parent=1 // pred_fallthru
      _
    // Predicated region
    $region6: #{tpu_custom_call.1} parent=1 // pred_check
      _
    $region7: #{tpu_custom_call.1} parent=1 // pred_check_branch
      %20 = sbr.rel (0) target = $region9
    $region8: #{tpu_custom_call.1} parent=1 // pred_region
      _
    $region9: #{tpu_custom_call.1} parent=1 // pred_fallthru
      _
    // Predicated region
    $region10: #{tpu_custom_call.1} parent=1 // pred_check
      _
    $region11: #{tpu_custom_call.1} parent=1 // pred_check_branch
      %22 = sbr.rel (0) target = $region13
    $region12: #{tpu_custom_call.1} parent=1 // pred_region
      %23 = dma.done [#allocation3], 96
    $region13: #{tpu_custom_call.1} parent=1 // pred_fallthru
      _
    %v24 = vld [vmem:[#allocation2] sm:$0x3f]
    %v25 = vld [vmem:[%s1] sm:$0x7]
    %v27 = vlaneseq
    %v28 = vshrl.u32 %v27, 7
    %v29 = vsub.s32 0, %v28
    %v30 = vrot.slane %v25, %v29
    %v31 = vlaneseq
    %v32 = vshrl.u32 %v31, 7
    %v33 = vsub.s32 1, %v32
    %v34 = vrot.slane %v25, %v33
    %v35 = vlaneseq
    %v36 = vshrl.u32 %v35, 7
    %v37 = vsub.s32 2, %v36
    %v38 = vrot.slane %v25, %v37
    %v39 = vcombine.low %v30, %v34
    %v41 = vunpack.c.l.s4 1983009808
    %v42 = vunpack.c.0.s8 %v41
    %v43 = vlaneseq
    %v44 = vshrl.u32 %v43, 7
    %v45 = vsub.s32 %v42, %v44
    %v46 = vrot.slane %v39, %v45
    %v48 = vunpack.c.l.s4 1983009808
    %v49 = vunpack.c.0.s8 %v48
    %v50 = vlaneseq
    %v51 = vshrl.u32 %v50, 7
    %v52 = vsub.s32 %v49, %v51
    %v53 = vrot.slane %v38, %v52
    %v54 = vcombine.low %v46, %v53
    %v56 = vadd.f32 %v24, %v54
    %57 = vst [vmem:[#allocation5] sm:$0x3f] %v56
    // Predicated region
    $region14: #{tpu_custom_call.1} parent=1 // pred_check
      _
    $region15: #{tpu_custom_call.1} parent=1 // pred_check_branch
      %59 = sbr.rel (0) target = $region17
    $region16: #{tpu_custom_call.1} parent=1 // pred_region
      %s61 = ssub.s32 96, 96
      %62 = vsyncadd [#allocation4], %s61
      %s64 = sshll.u32 [#allocation5], 4
      %s65 = int_to_ptr.vmem [resolvable:$true] %s64
      %67 = dma.vmem_to_hbm [thread:$0]  %s65, 96, %s2, [#allocation4]
    $region17: #{tpu_custom_call.1} parent=1 // pred_fallthru
      _
    // Predicated region
    $region18: #{tpu_custom_call.1} parent=1 // pred_check
      _
    $region19: #{tpu_custom_call.1} parent=1 // pred_check_branch
      %69 = sbr.rel (0) target = $region21
    $region20: #{tpu_custom_call.1} parent=1 // pred_region
      %70 = dma.done [#allocation4], 96
    $region21: #{tpu_custom_call.1} parent=1 // pred_fallthru
      _
    %71 = vsyncpa [#allocation3], 1
    %72 = vsyncpa [#allocation4], 1

</llo_original>
